<compile_context>
chip_gen: v5e
topology: v5e:2x2
jax: 0.10.0
libtpu: 0.0.40
codegen_flags: <defaults>
</compile_context>

<pallas_src>
import functools

import jax
import jax.numpy as jnp
from jax.experimental import pallas as pl
from jax.experimental.pallas import tpu as pltpu

# True / padded (lane-aligned) layer widths. Original: 9 -> 20 -> 128 -> 256 -> 2.
TRUE_IN, TRUE_OUT = 9, 2
D_IN, D_H1, D_H2, D_H3, D_OUT = 128, 128, 128, 256, 128
PAD_DIMS = [(D_IN, D_H1), (D_H1, D_H2), (D_H2, D_H3), (D_H3, D_OUT)]


def _round_up(n, m):
    return ((n + m - 1) // m) * m


def dqn_kernel(x_ref, w1_ref, b1_ref, w2_ref, b2_ref, w3_ref, b3_ref,
               w4_ref, b4_ref, o_ref, xpad_ref):
    # x tile: (B_TILE, 9) bf16. Splat into a zeroed (B_TILE, 128) VMEM scratch so
    # every matmul is (8,128)-clean; padded lanes are zero -> contribute nothing.
    xpad_ref[...] = jnp.zeros_like(xpad_ref)
    xpad_ref[:, :TRUE_IN] = x_ref[...]

    h = jnp.dot(xpad_ref[...], w1_ref[...],
                preferred_element_type=jnp.float32) + b1_ref[...]
    h = jnp.maximum(h, 0.0).astype(jnp.bfloat16)

    h = jnp.dot(h, w2_ref[...],
                preferred_element_type=jnp.float32) + b2_ref[...]
    h = jnp.maximum(h, 0.0).astype(jnp.bfloat16)

    h = jnp.dot(h, w3_ref[...],
                preferred_element_type=jnp.float32) + b3_ref[...]
    h = jnp.maximum(h, 0.0).astype(jnp.bfloat16)

    out = jnp.dot(h, w4_ref[...],
                  preferred_element_type=jnp.float32) + b4_ref[...]
    # Lane-dense (128-wide) bf16 store; true 2 outputs are sliced in the wrapper.
    o_ref[...] = out.astype(o_ref.dtype)


def pack_params(params):
    """One-time packing: zero-pad to lane-aligned widths; W -> bf16, b -> f32 (1, N).

    Call this once at model init and pass the result to dqn_forward.
    """
    packed = []
    for (w, b), (rows, cols) in zip(params, PAD_DIMS):
        w = jnp.asarray(w, jnp.float32)
        b = jnp.asarray(b, jnp.float32)
        wp = jnp.pad(w, ((0, rows - w.shape[0]), (0, cols - w.shape[1])))
        bp = jnp.pad(b, (0, cols - b.shape[0])).reshape(1, cols)
        packed.append(wp.astype(jnp.bfloat16))
        packed.append(bp)
    return tuple(packed)


@functools.partial(jax.jit, static_argnames=("b_tile",))
def dqn_forward(x, packed, *, b_tile=2048):
    """x: (B, 9) float32. packed: output of pack_params()."""
    B = x.shape[0]
    # Batch tile: multiple of 16 (bf16 sublane packing), capped by b_tile, and
    # capped so large batches keep >= 2 grid steps (both v7x TensorCores busy).
    bt = min(b_tile, _round_up(pl.cdiv(B, 2), 16))
    b_pad = _round_up(B, bt)
    grid = (b_pad // bt,)

    # Only batch-pad + cast the input (tiny: B x 9 bf16). Feature pad 9 -> 128
    # happens inside the kernel.
    x_bf16 = x.astype(jnp.bfloat16)
    if b_pad != B:
        x_bf16 = jnp.pad(x_bf16, ((0, b_pad - B), (0, 0)))

    # Weights/biases stay resident in VMEM across the whole batch grid.
    resident_specs = [pl.BlockSpec(arr.shape, lambda i: (0, 0)) for arr in packed]

    flops = 2 * b_pad * (D_IN * D_H1 + D_H1 * D_H2 + D_H2 * D_H3 + D_H3 * D_OUT)
    bytes_accessed = (
        x_bf16.size * x_bf16.dtype.itemsize
        + sum(a.size * a.dtype.itemsize for a in packed)
        + b_pad * D_OUT * 2
    )

    out = pl.pallas_call(
        dqn_kernel,
        out_shape=jax.ShapeDtypeStruct((b_pad, D_OUT), jnp.bfloat16),
        grid_spec=pltpu.PrefetchScalarGridSpec(
            num_scalar_prefetch=0,
            grid=grid,
            in_specs=[pl.BlockSpec((bt, TRUE_IN), lambda i: (i, 0))] + resident_specs,
            out_specs=pl.BlockSpec((bt, D_OUT), lambda i: (i, 0)),
            scratch_shapes=[pltpu.VMEM((bt, D_IN), jnp.bfloat16)],
        ),
        compiler_params=pltpu.CompilerParams(
            dimension_semantics=("parallel",),
        ),
        cost_estimate=pl.CostEstimate(
            flops=flops, transcendentals=0, bytes_accessed=bytes_accessed),
    )(x_bf16, *packed)

    return out[:B, :TRUE_OUT].astype(jnp.float32)


def init_linear(key, fan_in, fan_out):
    # Mirror PyTorch nn.Linear default init: U(-1/sqrt(fan_in), 1/sqrt(fan_in)).
    kw, kb = jax.random.split(key)
    bound = 1.0 / jnp.sqrt(float(fan_in))
    w = jax.random.uniform(kw, (fan_in, fan_out), jnp.float32, -bound, bound)
    b = jax.random.uniform(kb, (fan_out,), jnp.float32, -bound, bound)
    return w, b


def reference_forward_bf16(x, params):
    """Mirrors the kernel numerics: bf16 operands, f32 accumulation, bf16 out store."""
    h = x.astype(jnp.bfloat16)
    for i, (w, b) in enumerate(params):
        h = jnp.dot(h, w.astype(jnp.bfloat16),
                    preferred_element_type=jnp.float32) + b.astype(jnp.float32)
        if i < len(params) - 1:
            h = jnp.maximum(h, 0.0).astype(jnp.bfloat16)
    return h.astype(jnp.bfloat16).astype(jnp.float32)


def reference_forward_f32(x, params):
    h = x
    for i, (w, b) in enumerate(params):
        h = h @ w + b
        if i < len(params) - 1:
            h = jnp.maximum(h, 0.0)
    return h


if __name__ == "__main__":
    key = jax.random.PRNGKey(0)
    k_x, k1, k2, k3, k4 = jax.random.split(key, 5)

    B = 8  # small example batch
    x = jax.random.normal(k_x, (B, TRUE_IN), jnp.float32)

    dims = [(9, 20), (20, 128), (128, 256), (256, 2)]
    params = [init_linear(k, fi, fo)
              for k, (fi, fo) in zip((k1, k2, k3, k4), dims)]

    # Pack weights once (hoisted out of the per-call hot path).
    packed = pack_params(params)

    out = jax.block_until_ready(dqn_forward(x, packed))
    assert out.shape == (B, TRUE_OUT)

    # Tight check against a reference mirroring the kernel's bf16/f32 math.
    ref_bf16 = reference_forward_bf16(x, params)
    assert jnp.allclose(out, ref_bf16, atol=1e-2, rtol=1e-2), \
        "mismatch vs bf16-mirrored reference"

    # Looser sanity check against the exact fp32 PyTorch-equivalent math.
    ref_f32 = reference_forward_f32(x, params)
    assert jnp.allclose(out, ref_f32, atol=5e-2, rtol=5e-2), \
        "mismatch vs fp32 reference"

    print("KERNEL_OK")
</pallas_src>

<mosaic_0001>
module attributes {stable_mosaic.version = 11 : i64} {
  func.func @dqn_kernel(%arg0: i32, %arg1: memref<16x9xbf16, #tpu.memory_space<vmem>>, %arg2: memref<128x128xbf16, #tpu.memory_space<vmem>>, %arg3: memref<1x128xf32, #tpu.memory_space<vmem>>, %arg4: memref<128x128xbf16, #tpu.memory_space<vmem>>, %arg5: memref<1x128xf32, #tpu.memory_space<vmem>>, %arg6: memref<128x256xbf16, #tpu.memory_space<vmem>>, %arg7: memref<1x256xf32, #tpu.memory_space<vmem>>, %arg8: memref<256x128xbf16, #tpu.memory_space<vmem>>, %arg9: memref<1x128xf32, #tpu.memory_space<vmem>>, %arg10: memref<16x128xbf16, #tpu.memory_space<vmem>>, %arg11: memref<16x128xbf16, #tpu.memory_space<vmem>>) attributes {dimension_semantics = [#tpu.dimension_semantics<parallel>], iteration_bounds = array<i64: 1>, scalar_prefetch = 0 : i64, scratch_operands = 1 : i64, tpu.core_type = #tpu.core_type<tc>, window_params = [{transform_indices = @transform_0, window_bounds = array<i64: 16, 9>}, {pipeline_mode = #tpu.pipeline_mode<synchronous>, transform_indices = @transform_1, window_bounds = array<i64: 128, 128>}, {pipeline_mode = #tpu.pipeline_mode<synchronous>, transform_indices = @transform_2, window_bounds = array<i64: 1, 128>}, {pipeline_mode = #tpu.pipeline_mode<synchronous>, transform_indices = @transform_3, window_bounds = array<i64: 128, 128>}, {pipeline_mode = #tpu.pipeline_mode<synchronous>, transform_indices = @transform_4, window_bounds = array<i64: 1, 128>}, {pipeline_mode = #tpu.pipeline_mode<synchronous>, transform_indices = @transform_5, window_bounds = array<i64: 128, 256>}, {pipeline_mode = #tpu.pipeline_mode<synchronous>, transform_indices = @transform_6, window_bounds = array<i64: 1, 256>}, {pipeline_mode = #tpu.pipeline_mode<synchronous>, transform_indices = @transform_7, window_bounds = array<i64: 256, 128>}, {pipeline_mode = #tpu.pipeline_mode<synchronous>, transform_indices = @transform_8, window_bounds = array<i64: 1, 128>}, {transform_indices = @transform_9, window_bounds = array<i64: 16, 128>}]} {
    %cst = arith.constant 0.000000e+00 : bf16
    %0 = vector.broadcast %cst : bf16 to vector<16x128xbf16>
    %c0 = arith.constant 0 : index
    %c0_0 = arith.constant 0 : index
    %1 = vector.load %arg11[%c0, %c0_0] : memref<16x128xbf16, #tpu.memory_space<vmem>>, vector<16x128xbf16>
    tpu.vector_store %arg11[%c0, %c0_0], %0 {strides = array<i32>} : memref<16x128xbf16, #tpu.memory_space<vmem>>, vector<16x128xbf16>,
    %c0_1 = arith.constant 0 : index
    %c0_2 = arith.constant 0 : index
    %2 = vector.load %arg1[%c0_1, %c0_2] : memref<16x9xbf16, #tpu.memory_space<vmem>>, vector<16x9xbf16>
    %c0_3 = arith.constant 0 : index
    %c0_4 = arith.constant 0 : index
    %3 = vector.load %arg11[%c0_3, %c0_4] : memref<16x128xbf16, #tpu.memory_space<vmem>>, vector<16x9xbf16>
    tpu.vector_store %arg11[%c0_3, %c0_4], %2 {strides = array<i32>} : memref<16x128xbf16, #tpu.memory_space<vmem>>, vector<16x9xbf16>,
    %c0_5 = arith.constant 0 : index
    %c0_6 = arith.constant 0 : index
    %4 = vector.load %arg11[%c0_5, %c0_6] : memref<16x128xbf16, #tpu.memory_space<vmem>>, vector<16x128xbf16>
    %c0_7 = arith.constant 0 : index
    %c0_8 = arith.constant 0 : index
    %5 = vector.load %arg2[%c0_7, %c0_8] : memref<128x128xbf16, #tpu.memory_space<vmem>>, vector<128x128xbf16>
    %cst_9 = arith.constant dense<0.000000e+00> : vector<16x128xf32>
    %6 = tpu.matmul %4, %5, %cst_9 {dimension_numbers = #tpu.dot_dimension_numbers<[1], [0], [0], [1], [0, 0, 1, 1], [], []>} : vector<16x128xbf16>, vector<128x128xbf16>, vector<16x128xf32> -> vector<16x128xf32>
    %c0_10 = arith.constant 0 : index
    %c0_11 = arith.constant 0 : index
    %7 = vector.load %arg3[%c0_10, %c0_11] : memref<1x128xf32, #tpu.memory_space<vmem>>, vector<1x128xf32>
    %8 = vector.broadcast %7 : vector<1x128xf32> to vector<16x128xf32>
    %9 = arith.addf %6, %8 : vector<16x128xf32>
    %cst_12 = arith.constant 0.000000e+00 : f32
    %10 = vector.broadcast %cst_12 : f32 to vector<16x128xf32>
    %11 = arith.maximumf %9, %10 : vector<16x128xf32>
    %12 = arith.truncf %11 : vector<16x128xf32> to vector<16x128xbf16>
    %c0_13 = arith.constant 0 : index
    %c0_14 = arith.constant 0 : index
    %13 = vector.load %arg4[%c0_13, %c0_14] : memref<128x128xbf16, #tpu.memory_space<vmem>>, vector<128x128xbf16>
    %cst_15 = arith.constant dense<0.000000e+00> : vector<16x128xf32>
    %14 = tpu.matmul %12, %13, %cst_15 {dimension_numbers = #tpu.dot_dimension_numbers<[1], [0], [0], [1], [0, 0, 1, 1], [], []>} : vector<16x128xbf16>, vector<128x128xbf16>, vector<16x128xf32> -> vector<16x128xf32>
    %c0_16 = arith.constant 0 : index
    %c0_17 = arith.constant 0 : index
    %15 = vector.load %arg5[%c0_16, %c0_17] : memref<1x128xf32, #tpu.memory_space<vmem>>, vector<1x128xf32>
    %16 = vector.broadcast %15 : vector<1x128xf32> to vector<16x128xf32>
    %17 = arith.addf %14, %16 : vector<16x128xf32>
    %cst_18 = arith.constant 0.000000e+00 : f32
    %18 = vector.broadcast %cst_18 : f32 to vector<16x128xf32>
    %19 = arith.maximumf %17, %18 : vector<16x128xf32>
    %20 = arith.truncf %19 : vector<16x128xf32> to vector<16x128xbf16>
    %c0_19 = arith.constant 0 : index
    %c0_20 = arith.constant 0 : index
    %21 = vector.load %arg6[%c0_19, %c0_20] : memref<128x256xbf16, #tpu.memory_space<vmem>>, vector<128x256xbf16>
    %cst_21 = arith.constant dense<0.000000e+00> : vector<16x256xf32>
    %22 = tpu.matmul %20, %21, %cst_21 {dimension_numbers = #tpu.dot_dimension_numbers<[1], [0], [0], [1], [0, 0, 1, 1], [], []>} : vector<16x128xbf16>, vector<128x256xbf16>, vector<16x256xf32> -> vector<16x256xf32>
    %c0_22 = arith.constant 0 : index
    %c0_23 = arith.constant 0 : index
    %23 = vector.load %arg7[%c0_22, %c0_23] : memref<1x256xf32, #tpu.memory_space<vmem>>, vector<1x256xf32>
    %24 = vector.broadcast %23 : vector<1x256xf32> to vector<16x256xf32>
    %25 = arith.addf %22, %24 : vector<16x256xf32>
    %cst_24 = arith.constant 0.000000e+00 : f32
    %26 = vector.broadcast %cst_24 : f32 to vector<16x256xf32>
    %27 = arith.maximumf %25, %26 : vector<16x256xf32>
    %28 = arith.truncf %27 : vector<16x256xf32> to vector<16x256xbf16>
    %c0_25 = arith.constant 0 : index
    %c0_26 = arith.constant 0 : index
    %29 = vector.load %arg8[%c0_25, %c0_26] : memref<256x128xbf16, #tpu.memory_space<vmem>>, vector<256x128xbf16>
    %cst_27 = arith.constant dense<0.000000e+00> : vector<16x128xf32>
    %30 = tpu.matmul %28, %29, %cst_27 {dimension_numbers = #tpu.dot_dimension_numbers<[1], [0], [0], [1], [0, 0, 1, 1], [], []>} : vector<16x256xbf16>, vector<256x128xbf16>, vector<16x128xf32> -> vector<16x128xf32>
    %c0_28 = arith.constant 0 : index
    %c0_29 = arith.constant 0 : index
    %31 = vector.load %arg9[%c0_28, %c0_29] : memref<1x128xf32, #tpu.memory_space<vmem>>, vector<1x128xf32>
    %32 = vector.broadcast %31 : vector<1x128xf32> to vector<16x128xf32>
    %33 = arith.addf %30, %32 : vector<16x128xf32>
    %34 = arith.truncf %33 : vector<16x128xf32> to vector<16x128xbf16>
    %c0_30 = arith.constant 0 : index
    %c0_31 = arith.constant 0 : index
    %35 = vector.load %arg10[%c0_30, %c0_31] : memref<16x128xbf16, #tpu.memory_space<vmem>>, vector<16x128xbf16>
    tpu.vector_store %arg10[%c0_30, %c0_31], %34 {strides = array<i32>} : memref<16x128xbf16, #tpu.memory_space<vmem>>, vector<16x128xbf16>,
    return
  }
  func.func @transform_0(%arg0: i32) -> (i32, i32) {
    %c0_i32 = arith.constant 0 : i32
    %c0_i32_0 = arith.constant 0 : i32
    return %arg0, %c0_i32 : i32, i32
  }
  func.func @transform_1(%arg0: i32) -> (i32, i32) {
    %c0_i32 = arith.constant 0 : i32
    %c0_i32_0 = arith.constant 0 : i32
    %c0_i32_1 = arith.constant 0 : i32
    return %c0_i32, %c0_i32_0 : i32, i32
  }
  func.func @transform_2(%arg0: i32) -> (i32, i32) {
    %c0_i32 = arith.constant 0 : i32
    %c0_i32_0 = arith.constant 0 : i32
    %c0_i32_1 = arith.constant 0 : i32
    return %c0_i32, %c0_i32_0 : i32, i32
  }
  func.func @transform_3(%arg0: i32) -> (i32, i32) {
    %c0_i32 = arith.constant 0 : i32
    %c0_i32_0 = arith.constant 0 : i32
    %c0_i32_1 = arith.constant 0 : i32
    return %c0_i32, %c0_i32_0 : i32, i32
  }
  func.func @transform_4(%arg0: i32) -> (i32, i32) {
    %c0_i32 = arith.constant 0 : i32
    %c0_i32_0 = arith.constant 0 : i32
    %c0_i32_1 = arith.constant 0 : i32
    return %c0_i32, %c0_i32_0 : i32, i32
  }
  func.func @transform_5(%arg0: i32) -> (i32, i32) {
    %c0_i32 = arith.constant 0 : i32
    %c0_i32_0 = arith.constant 0 : i32
    %c0_i32_1 = arith.constant 0 : i32
    return %c0_i32, %c0_i32_0 : i32, i32
  }
  func.func @transform_6(%arg0: i32) -> (i32, i32) {
    %c0_i32 = arith.constant 0 : i32
    %c0_i32_0 = arith.constant 0 : i32
    %c0_i32_1 = arith.constant 0 : i32
    return %c0_i32, %c0_i32_0 : i32, i32
  }
  func.func @transform_7(%arg0: i32) -> (i32, i32) {
    %c0_i32 = arith.constant 0 : i32
    %c0_i32_0 = arith.constant 0 : i32
    %c0_i32_1 = arith.constant 0 : i32
    return %c0_i32, %c0_i32_0 : i32, i32
  }
  func.func @transform_8(%arg0: i32) -> (i32, i32) {
    %c0_i32 = arith.constant 0 : i32
    %c0_i32_0 = arith.constant 0 : i32
    %c0_i32_1 = arith.constant 0 : i32
    return %c0_i32, %c0_i32_0 : i32, i32
  }
  func.func @transform_9(%arg0: i32) -> (i32, i32) {
    %c0_i32 = arith.constant 0 : i32
    %c0_i32_0 = arith.constant 0 : i32
    return %arg0, %c0_i32 : i32, i32
  }
}

</mosaic_0001>

<llo_original>
// kernel: dqn_forward.1
$region0: #{dqn_forward.1}
  #allocation0 [shape = 'u32[]', space=smem, size = 0x4, offset = 0x4, fixed_abs, tag = 'smem constant byte address 0x4 - core index']
  #allocation1 [shape = 'u32[72,128]{1,0:T(1,128)}', space=vmem, size = 0x9000, scoped, tag = 'internal scratch']
  #allocation2 [shape = 'bf16[16,128]{1,0:T(8,128)(2,1)}', space=vmem, size = 0x1000, scoped, tag = 'scratch operand']
  %s0 = inlined_call_operand.vmem [shape: bf16[16,9], index: 0, kind: input, shape index: {}]
  %s1 = inlined_call_operand.hbm [shape: bf16[128,128], index: 1, kind: input, shape index: {}]
  %s2 = inlined_call_operand.vmem [shape: f32[1,128], index: 2, kind: input, shape index: {}]
  %s3 = inlined_call_operand.hbm [shape: bf16[128,128], index: 3, kind: input, shape index: {}]
  %s4 = inlined_call_operand.vmem [shape: f32[1,128], index: 4, kind: input, shape index: {}]
  %s5 = inlined_call_operand.hbm [shape: bf16[128,256], index: 5, kind: input, shape index: {}]
  %s6 = inlined_call_operand.vmem [shape: f32[1,256], index: 6, kind: input, shape index: {}]
  %s7 = inlined_call_operand.hbm [shape: bf16[256,128], index: 7, kind: input, shape index: {}]
  %s8 = inlined_call_operand.vmem [shape: f32[1,128], index: 8, kind: input, shape index: {}]
  %s9 = inlined_call_operand.vmem [shape: bf16[16,128], index: 9, kind: output, shape index: {}]
  %s10 = sld [smem:[#allocation0]]
  $region62: #{dqn_forward.1} parent=0
    _
  %s12 = ssub.s32 1, %s10
  %s13 = scalar_select 0, %s12, %s10
  $region1: #{dqn_forward.1} parent=0
    #allocation3 [shape = 'u8[32768]{0}', space=vmem, size = 0x8000, scoped, tag = 'input window, operand 1, single buffered']
    #allocation4 [shape = 's32[1]{0}', space=sflag, size = 0x4, scoped, tag = 'scoped memory for dqn_forward.1']
    #allocation5 [shape = 'u8[32768]{0}', space=vmem, size = 0x8000, scoped, tag = 'input window, operand 3, single buffered']
    #allocation6 [shape = 's32[1]{0}', space=sflag, size = 0x4, scoped, tag = 'scoped memory for dqn_forward.1']
    #allocation7 [shape = 'u8[65536]{0}', space=vmem, size = 0x10000, scoped, tag = 'input window, operand 5, single buffered']
    #allocation8 [shape = 'u8[65536]{0}', space=vmem, size = 0x10000, scoped, tag = 'input window, operand 7, single buffered']
    #allocation9 [shape = 's32[1]{0}', space=sflag, size = 0x4, scoped, tag = 'scoped memory for dqn_forward.1']
    %14 = vsyncpa [#allocation4], 0
    %15 = vsyncpa [#allocation6], 0
    %16 = vsyncpa [#allocation9], 0
    // Predicated region
    $region2: #{dqn_forward.1} parent=1 // pred_check
      _
    $region3: #{dqn_forward.1} parent=1 // pred_check_branch
      %18 = sbr.rel (0) target = $region5
    $region4: #{dqn_forward.1} parent=1 // pred_region
      _
    $region5: #{dqn_forward.1} parent=1 // pred_fallthru
      _
    // Predicated region
    $region6: #{dqn_forward.1} parent=1 // pred_check
      _
    $region7: #{dqn_forward.1} parent=1 // pred_check_branch
      %20 = sbr.rel (0) target = $region9
    $region8: #{dqn_forward.1} parent=1 // pred_region
      %22 = vsyncadd [#allocation4], 0
      %s23 = sshll.u32 %s1, 4
      %s24 = int_to_ptr.hbm [resolvable:$true] %s23
      %s25 = sshll.u32 [#allocation3], 4
      %s26 = int_to_ptr.vmem [resolvable:$true] %s25
      %31 = dma.hbm_to_vmem [thread:$0]  %s24, 1024, %s26, [#allocation4], 64, 64, 4
    $region9: #{dqn_forward.1} parent=1 // pred_fallthru
      _
    // Predicated region
    $region10: #{dqn_forward.1} parent=1 // pred_check
      _
    $region11: #{dqn_forward.1} parent=1 // pred_check_branch
      %33 = sbr.rel (0) target = $region13
    $region12: #{dqn_forward.1} parent=1 // pred_region
      _
    $region13: #{dqn_forward.1} parent=1 // pred_fallthru
      _
    // Predicated region
    $region14: #{dqn_forward.1} parent=1 // pred_check
      _
    $region15: #{dqn_forward.1} parent=1 // pred_check_branch
      %35 = sbr.rel (0) target = $region17
    $region16: #{dqn_forward.1} parent=1 // pred_region
      %37 = vsyncadd [#allocation6], 0
      %s38 = sshll.u32 %s3, 4
      %s39 = int_to_ptr.hbm [resolvable:$true] %s38
      %s40 = sshll.u32 [#allocation5], 4
      %s41 = int_to_ptr.vmem [resolvable:$true] %s40
      %46 = dma.hbm_to_vmem [thread:$0]  %s39, 1024, %s41, [#allocation6], 64, 64, 4
    $region17: #{dqn_forward.1} parent=1 // pred_fallthru
      _
    // Predicated region
    $region18: #{dqn_forward.1} parent=1 // pred_check
      _
    $region19: #{dqn_forward.1} parent=1 // pred_check_branch
      %48 = sbr.rel (0) target = $region21
    $region20: #{dqn_forward.1} parent=1 // pred_region
      _
    $region21: #{dqn_forward.1} parent=1 // pred_fallthru
      _
    // Predicated region
    $region22: #{dqn_forward.1} parent=1 // pred_check
      _
    $region23: #{dqn_forward.1} parent=1 // pred_check_branch
      %50 = sbr.rel (0) target = $region25
    $region24: #{dqn_forward.1} parent=1 // pred_region
      %52 = vsyncadd [#allocation6], 0
      %s53 = sshll.u32 %s5, 4
      %s54 = int_to_ptr.hbm [resolvable:$true] %s53
      %s55 = sshll.u32 [#allocation7], 4
      %s56 = int_to_ptr.vmem [resolvable:$true] %s55
      %61 = dma.hbm_to_vmem [thread:$0]  %s54, 2048, %s56, [#allocation6], 128, 128, 8
    $region25: #{dqn_forward.1} parent=1 // pred_fallthru
      _
    // Predicated region
    $region26: #{dqn_forward.1} parent=1 // pred_check
      _
    $region27: #{dqn_forward.1} parent=1 // pred_check_branch
      %63 = sbr.rel (0) target = $region29
    $region28: #{dqn_forward.1} parent=1 // pred_region
      _
    $region29: #{dqn_forward.1} parent=1 // pred_fallthru
      _
    // Predicated region
    $region30: #{dqn_forward.1} parent=1 // pred_check
      _
    $region31: #{dqn_forward.1} parent=1 // pred_check_branch
      %65 = sbr.rel (0) target = $region33
    $region32: #{dqn_forward.1} parent=1 // pred_region
      %67 = vsyncadd [#allocation9], 0
      %s68 = sshll.u32 %s7, 4
      %s69 = int_to_ptr.hbm [resolvable:$true] %s68
      %s70 = sshll.u32 [#allocation8], 4
      %s71 = int_to_ptr.vmem [resolvable:$true] %s70
      %76 = dma.hbm_to_vmem [thread:$0]  %s69, 2048, %s71, [#allocation9], 64, 64, 4
    $region33: #{dqn_forward.1} parent=1 // pred_fallthru
      _
    // Predicated region
    $region34: #{dqn_forward.1} parent=1 // pred_check
      _
    $region35: #{dqn_forward.1} parent=1 // pred_check_branch
      %78 = sbr.rel (0) target = $region37
    $region36: #{dqn_forward.1} parent=1 // pred_region
      _
    $region37: #{dqn_forward.1} parent=1 // pred_fallthru
      _
    // Predicated region
    $region38: #{dqn_forward.1} parent=1 // pred_check
      _
    $region39: #{dqn_forward.1} parent=1 // pred_check_branch
      %80 = sbr.rel (0) target = $region41
    $region40: #{dqn_forward.1} parent=1 // pred_region
      %82 = dma.done [#allocation4], 1024
    $region41: #{dqn_forward.1} parent=1 // pred_fallthru
      _
    // Predicated region
    $region42: #{dqn_forward.1} parent=1 // pred_check
      _
    $region43: #{dqn_forward.1} parent=1 // pred_check_branch
      %84 = sbr.rel (0) target = $region45
    $region44: #{dqn_forward.1} parent=1 // pred_region
      %86 = dma.done [#allocation6], 1024
    $region45: #{dqn_forward.1} parent=1 // pred_fallthru
      _
    // Predicated region
    $region46: #{dqn_forward.1} parent=1 // pred_check
      _
    $region47: #{dqn_forward.1} parent=1 // pred_check_branch
      %88 = sbr.rel (0) target = $region49
    $region48: #{dqn_forward.1} parent=1 // pred_region
      %90 = dma.done [#allocation6], 2048
    $region49: #{dqn_forward.1} parent=1 // pred_fallthru
      _
    // Predicated region
    $region50: #{dqn_forward.1} parent=1 // pred_check
      _
    $region51: #{dqn_forward.1} parent=1 // pred_check_branch
      %92 = sbr.rel (0) target = $region53
    $region52: #{dqn_forward.1} parent=1 // pred_region
      %94 = dma.done [#allocation9], 2048
    $region53: #{dqn_forward.1} parent=1 // pred_fallthru
      _
    %96 = vst [vmem:[#allocation2] sm:$0xf] 0
    %97 = vst [vmem:[#allocation2 + $0x4] sm:$0xf] 0
    %v98 = vld [vmem:[%s0] sm:$0xf]
    %v99 = vld [vmem:[%s0 + $0x4] sm:$0xf]
    %vm100 = vcmask 68608
    %101 = vst.msk [vmem:[#allocation2] sm:$0xf] %vm100, %v98
    %102 = vst.msk [vmem:[#allocation2 + $0x4] sm:$0xf] %vm100, %v99
    %v103 = vld [vmem:[#allocation2] sm:$0xf]
    %v104 = vld [vmem:[#allocation2 + $0x4] sm:$0xf]
    %v105 = vld [vmem:[#allocation3] sm:$0xf]
    %v106 = vld [vmem:[#allocation3 + $0x4] sm:$0xf]
    %v107 = vld [vmem:[#allocation3 + $0x8] sm:$0xf]
    %v108 = vld [vmem:[#allocation3 + $0xc] sm:$0xf]
    %v109 = vld [vmem:[#allocation3 + $0x10] sm:$0xf]
    %v110 = vld [vmem:[#allocation3 + $0x14] sm:$0xf]
    %v111 = vld [vmem:[#allocation3 + $0x18] sm:$0xf]
    %v112 = vld [vmem:[#allocation3 + $0x1c] sm:$0xf]
    %v113 = vld [vmem:[#allocation3 + $0x20] sm:$0xf]
    %v114 = vld [vmem:[#allocation3 + $0x24] sm:$0xf]
    %v115 = vld [vmem:[#allocation3 + $0x28] sm:$0xf]
    %v116 = vld [vmem:[#allocation3 + $0x2c] sm:$0xf]
    %v117 = vld [vmem:[#allocation3 + $0x30] sm:$0xf]
    %v118 = vld [vmem:[#allocation3 + $0x34] sm:$0xf]
    %v119 = vld [vmem:[#allocation3 + $0x38] sm:$0xf]
    %v120 = vld [vmem:[#allocation3 + $0x3c] sm:$0xf]
    %v121 = vld [vmem:[%s2] sm:$0x1]
    %v123 = vperm.slane %v121, 0
    %v127 = vunpack.c.l.b16 %v103
    %v128 = vunpack.c.l.b16 %v104
    %v129 = vpack.c.b16 %v128, %v127
    %v147 = vunpack.c.l.b16 %v105
    %v148 = vunpack.c.l.b16 %v106
    %v149 = vunpack.c.l.b16 %v107
    %v150 = vunpack.c.l.b16 %v108
    %v151 = vunpack.c.l.b16 %v109
    %v152 = vunpack.c.l.b16 %v110
    %v153 = vunpack.c.l.b16 %v111
    %v154 = vunpack.c.l.b16 %v112
    %v155 = vunpack.c.l.b16 %v113
    %v156 = vunpack.c.l.b16 %v114
    %v157 = vunpack.c.l.b16 %v115
    %v158 = vunpack.c.l.b16 %v116
    %v159 = vunpack.c.l.b16 %v117
    %v160 = vunpack.c.l.b16 %v118
    %v161 = vunpack.c.l.b16 %v119
    %v162 = vunpack.c.l.b16 %v120
    %v163 = vpack.c.b16 %v148, %v147
    %v164 = vpack.c.b16 %v150, %v149
    %v165 = vpack.c.b16 %v152, %v151
    %v166 = vpack.c.b16 %v154, %v153
    %v167 = vpack.c.b16 %v156, %v155
    %v168 = vpack.c.b16 %v158, %v157
    %v169 = vpack.c.b16 %v160, %v159
    %v170 = vpack.c.b16 %v162, %v161
    %179 = vmatpush.bf16.msra.mxu0 %v170
    %180 = vmatpush.bf16.msra.mxu0 %v169
    %181 = vmatpush.bf16.msra.mxu0 %v168
    %182 = vmatpush.bf16.msra.mxu0 %v167
    %183 = vmatpush.bf16.msra.mxu0 %v166
    %184 = vmatpush.bf16.msra.mxu0 %v165
    %185 = vmatpush.bf16.msra.mxu0 %v164
    %186 = vmatpush.bf16.msra.mxu0 %v163
    %187 = vmatmul.bf16.gmra.mxu0 %v129
    %v188 = vpop.f32.mrf.mxu0
    %v189 = vadd.f32 %v123, %v188
    %v190 = vpop.f32.mrf.mxu0
    %v191 = vadd.f32 %v123, %v190
    %192 = vdwg.mxu0
    %v193 = vmax.f32 %v189, 0.0
    %v194 = vmax.f32 %v191, 0.0
    %v195 = vpack.c.bf16 %v194, %v193
    %v196 = vld [vmem:[#allocation5] sm:$0xf]
    %v197 = vld [vmem:[#allocation5 + $0x4] sm:$0xf]
    %v198 = vld [vmem:[#allocation5 + $0x8] sm:$0xf]
    %v199 = vld [vmem:[#allocation5 + $0xc] sm:$0xf]
    %v200 = vld [vmem:[#allocation5 + $0x10] sm:$0xf]
    %v201 = vld [vmem:[#allocation5 + $0x14] sm:$0xf]
    %v202 = vld [vmem:[#allocation5 + $0x18] sm:$0xf]
    %v203 = vld [vmem:[#allocation5 + $0x1c] sm:$0xf]
    %v204 = vld [vmem:[#allocation5 + $0x20] sm:$0xf]
    %v205 = vld [vmem:[#allocation5 + $0x24] sm:$0xf]
    %v206 = vld [vmem:[#allocation5 + $0x28] sm:$0xf]
    %v207 = vld [vmem:[#allocation5 + $0x2c] sm:$0xf]
    %v208 = vld [vmem:[#allocation5 + $0x30] sm:$0xf]
    %v209 = vld [vmem:[#allocation5 + $0x34] sm:$0xf]
    %v210 = vld [vmem:[#allocation5 + $0x38] sm:$0xf]
    %v211 = vld [vmem:[#allocation5 + $0x3c] sm:$0xf]
    %v212 = vld [vmem:[%s4] sm:$0x1]
    %v214 = vperm.slane %v212, 0
    %v232 = vunpack.c.l.b16 %v196
    %v233 = vunpack.c.l.b16 %v197
    %v234 = vunpack.c.l.b16 %v198
    %v235 = vunpack.c.l.b16 %v199
    %v236 = vunpack.c.l.b16 %v200
    %v237 = vunpack.c.l.b16 %v201
    %v238 = vunpack.c.l.b16 %v202
    %v239 = vunpack.c.l.b16 %v203
    %v240 = vunpack.c.l.b16 %v204
    %v241 = vunpack.c.l.b16 %v205
    %v242 = vunpack.c.l.b16 %v206
    %v243 = vunpack.c.l.b16 %v207
    %v244 = vunpack.c.l.b16 %v208
    %v245 = vunpack.c.l.b16 %v209
    %v246 = vunpack.c.l.b16 %v210
    %v247 = vunpack.c.l.b16 %v211
    %v248 = vpack.c.b16 %v233, %v232
    %v249 = vpack.c.b16 %v235, %v234
    %v250 = vpack.c.b16 %v237, %v236
    %v251 = vpack.c.b16 %v239, %v238
    %v252 = vpack.c.b16 %v241, %v240
    %v253 = vpack.c.b16 %v243, %v242
    %v254 = vpack.c.b16 %v245, %v244
    %v255 = vpack.c.b16 %v247, %v246
    %264 = vmatpush.bf16.msra.mxu0 %v255
    %265 = vmatpush.bf16.msra.mxu0 %v254
    %266 = vmatpush.bf16.msra.mxu0 %v253
    %267 = vmatpush.bf16.msra.mxu0 %v252
    %268 = vmatpush.bf16.msra.mxu0 %v251
    %269 = vmatpush.bf16.msra.mxu0 %v250
    %270 = vmatpush.bf16.msra.mxu0 %v249
    %271 = vmatpush.bf16.msra.mxu0 %v248
    %272 = vmatmul.bf16.gmra.mxu0 %v195
    %v273 = vpop.f32.mrf.mxu0
    %v274 = vadd.f32 %v214, %v273
    %v275 = vpop.f32.mrf.mxu0
    %v276 = vadd.f32 %v214, %v275
    %277 = vdwg.mxu0
    %v278 = vmax.f32 %v274, 0.0
    %v279 = vmax.f32 %v276, 0.0
    %v280 = vpack.c.bf16 %v279, %v278
    %v281 = vld [vmem:[#allocation7] sm:$0xff]
    %v282 = vld [vmem:[#allocation7 + $0x8] sm:$0xff]
    %v283 = vld [vmem:[#allocation7 + $0x10] sm:$0xff]
    %v284 = vld [vmem:[#allocation7 + $0x18] sm:$0xff]
    %v285 = vld [vmem:[#allocation7 + $0x20] sm:$0xff]
    %v286 = vld [vmem:[#allocation7 + $0x28] sm:$0xff]
    %v287 = vld [vmem:[#allocation7 + $0x30] sm:$0xff]
    %v288 = vld [vmem:[#allocation7 + $0x38] sm:$0xff]
    %v289 = vld [vmem:[#allocation7 + $0x40] sm:$0xff]
    %v290 = vld [vmem:[#allocation7 + $0x48] sm:$0xff]
    %v291 = vld [vmem:[#allocation7 + $0x50] sm:$0xff]
    %v292 = vld [vmem:[#allocation7 + $0x58] sm:$0xff]
    %v293 = vld [vmem:[#allocation7 + $0x60] sm:$0xff]
    %v294 = vld [vmem:[#allocation7 + $0x68] sm:$0xff]
    %v295 = vld [vmem:[#allocation7 + $0x70] sm:$0xff]
    %v296 = vld [vmem:[#allocation7 + $0x78] sm:$0xff]
    %v297 = vld [vmem:[%s6] sm:$0x3]
    %v299 = vperm.slane %v297, 0
    %v300 = vperm.slane %v297, 1
    %v319 = vunpack.c.l.b16 %v281
    %v320 = vunpack.c.h.b16 %v281
    %v321 = vunpack.c.l.b16 %v282
    %v322 = vunpack.c.h.b16 %v282
    %v323 = vunpack.c.l.b16 %v283
    %v324 = vunpack.c.h.b16 %v283
    %v325 = vunpack.c.l.b16 %v284
    %v326 = vunpack.c.h.b16 %v284
    %v327 = vunpack.c.l.b16 %v285
    %v328 = vunpack.c.h.b16 %v285
    %v329 = vunpack.c.l.b16 %v286
    %v330 = vunpack.c.h.b16 %v286
    %v331 = vunpack.c.l.b16 %v287
    %v332 = vunpack.c.h.b16 %v287
    %v333 = vunpack.c.l.b16 %v288
    %v334 = vunpack.c.h.b16 %v288
    %v335 = vunpack.c.l.b16 %v289
    %v336 = vunpack.c.h.b16 %v289
    %v337 = vunpack.c.l.b16 %v290
    %v338 = vunpack.c.h.b16 %v290
    %v339 = vunpack.c.l.b16 %v291
    %v340 = vunpack.c.h.b16 %v291
    %v341 = vunpack.c.l.b16 %v292
    %v342 = vunpack.c.h.b16 %v292
    %v343 = vunpack.c.l.b16 %v293
    %v344 = vunpack.c.h.b16 %v293
    %v345 = vunpack.c.l.b16 %v294
    %v346 = vunpack.c.h.b16 %v294
    %v347 = vunpack.c.l.b16 %v295
    %v348 = vunpack.c.h.b16 %v295
    %v349 = vunpack.c.l.b16 %v296
    %v350 = vunpack.c.h.b16 %v296
    %v351 = vpack.c.b16 %v321, %v319
    %v352 = vpack.c.b16 %v322, %v320
    %v353 = vpack.c.b16 %v325, %v323
    %v354 = vpack.c.b16 %v326, %v324
    %v355 = vpack.c.b16 %v329, %v327
    %v356 = vpack.c.b16 %v330, %v328
    %v357 = vpack.c.b16 %v333, %v331
    %v358 = vpack.c.b16 %v334, %v332
    %v359 = vpack.c.b16 %v337, %v335
    %v360 = vpack.c.b16 %v338, %v336
    %v361 = vpack.c.b16 %v341, %v339
    %v362 = vpack.c.b16 %v342, %v340
    %v363 = vpack.c.b16 %v345, %v343
    %v364 = vpack.c.b16 %v346, %v344
    %v365 = vpack.c.b16 %v349, %v347
    %v366 = vpack.c.b16 %v350, %v348
    %383 = vmatpush.bf16.msra.mxu0 %v365
    %384 = vmatpush.bf16.msra.mxu0 %v363
    %385 = vmatpush.bf16.msra.mxu0 %v361
    %386 = vmatpush.bf16.msra.mxu0 %v359
    %387 = vmatpush.bf16.msra.mxu0 %v357
    %388 = vmatpush.bf16.msra.mxu0 %v355
    %389 = vmatpush.bf16.msra.mxu0 %v353
    %390 = vmatpush.bf16.msra.mxu0 %v351
    %391 = vmatmul.bf16.gmra.mxu0 %v280
    %v392 = vpop.f32.mrf.mxu0
    %v393 = vadd.f32 %v299, %v392
    %v394 = vpop.f32.mrf.mxu0
    %v395 = vadd.f32 %v299, %v394
    %396 = vdwg.mxu0
    %397 = vmatpush.bf16.msra.mxu0 %v366
    %398 = vmatpush.bf16.msra.mxu0 %v364
    %399 = vmatpush.bf16.msra.mxu0 %v362
    %400 = vmatpush.bf16.msra.mxu0 %v360
    %401 = vmatpush.bf16.msra.mxu0 %v358
    %402 = vmatpush.bf16.msra.mxu0 %v356
    %403 = vmatpush.bf16.msra.mxu0 %v354
    %404 = vmatpush.bf16.msra.mxu0 %v352
    %405 = vmatmul.bf16.gmra.mxu0 %v280
    %v406 = vpop.f32.mrf.mxu0
    %v407 = vadd.f32 %v300, %v406
    %v408 = vpop.f32.mrf.mxu0
    %v409 = vadd.f32 %v300, %v408
    %410 = vdwg.mxu0
    %v411 = vmax.f32 %v393, 0.0
    %v412 = vmax.f32 %v407, 0.0
    %v413 = vmax.f32 %v395, 0.0
    %v414 = vmax.f32 %v409, 0.0
    %v415 = vpack.c.bf16 %v413, %v411
    %v416 = vpack.c.bf16 %v414, %v412
    %v417 = vld [vmem:[#allocation8] sm:$0xf]
    %v418 = vld [vmem:[#allocation8 + $0x4] sm:$0xf]
    %v419 = vld [vmem:[#allocation8 + $0x8] sm:$0xf]
    %v420 = vld [vmem:[#allocation8 + $0xc] sm:$0xf]
    %v421 = vld [vmem:[#allocation8 + $0x10] sm:$0xf]
    %v422 = vld [vmem:[#allocation8 + $0x14] sm:$0xf]
    %v423 = vld [vmem:[#allocation8 + $0x18] sm:$0xf]
    %v424 = vld [vmem:[#allocation8 + $0x1c] sm:$0xf]
    %v425 = vld [vmem:[#allocation8 + $0x20] sm:$0xf]
    %v426 = vld [vmem:[#allocation8 + $0x24] sm:$0xf]
    %v427 = vld [vmem:[#allocation8 + $0x28] sm:$0xf]
    %v428 = vld [vmem:[#allocation8 + $0x2c] sm:$0xf]
    %v429 = vld [vmem:[#allocation8 + $0x30] sm:$0xf]
    %v430 = vld [vmem:[#allocation8 + $0x34] sm:$0xf]
    %v431 = vld [vmem:[#allocation8 + $0x38] sm:$0xf]
    %v432 = vld [vmem:[#allocation8 + $0x3c] sm:$0xf]
    %v433 = vld [vmem:[#allocation8 + $0x40] sm:$0xf]
    %v434 = vld [vmem:[#allocation8 + $0x44] sm:$0xf]
    %v435 = vld [vmem:[#allocation8 + $0x48] sm:$0xf]
    %v436 = vld [vmem:[#allocation8 + $0x4c] sm:$0xf]
    %v437 = vld [vmem:[#allocation8 + $0x50] sm:$0xf]
    %v438 = vld [vmem:[#allocation8 + $0x54] sm:$0xf]
    %v439 = vld [vmem:[#allocation8 + $0x58] sm:$0xf]
    %v440 = vld [vmem:[#allocation8 + $0x5c] sm:$0xf]
    %v441 = vld [vmem:[#allocation8 + $0x60] sm:$0xf]
    %v442 = vld [vmem:[#allocation8 + $0x64] sm:$0xf]
    %v443 = vld [vmem:[#allocation8 + $0x68] sm:$0xf]
    %v444 = vld [vmem:[#allocation8 + $0x6c] sm:$0xf]
    %v445 = vld [vmem:[#allocation8 + $0x70] sm:$0xf]
    %v446 = vld [vmem:[#allocation8 + $0x74] sm:$0xf]
    %v447 = vld [vmem:[#allocation8 + $0x78] sm:$0xf]
    %v448 = vld [vmem:[#allocation8 + $0x7c] sm:$0xf]
    %v449 = vld [vmem:[%s8] sm:$0x1]
    %v451 = vperm.slane %v449, 0
    %v485 = vunpack.c.l.b16 %v417
    %v486 = vunpack.c.l.b16 %v418
    %v487 = vunpack.c.l.b16 %v419
    %v488 = vunpack.c.l.b16 %v420
    %v489 = vunpack.c.l.b16 %v421
    %v490 = vunpack.c.l.b16 %v422
    %v491 = vunpack.c.l.b16 %v423
    %v492 = vunpack.c.l.b16 %v424
    %v493 = vunpack.c.l.b16 %v425
    %v494 = vunpack.c.l.b16 %v426
    %v495 = vunpack.c.l.b16 %v427
    %v496 = vunpack.c.l.b16 %v428
    %v497 = vunpack.c.l.b16 %v429
    %v498 = vunpack.c.l.b16 %v430
    %v499 = vunpack.c.l.b16 %v431
    %v500 = vunpack.c.l.b16 %v432
    %v501 = vunpack.c.l.b16 %v433
    %v502 = vunpack.c.l.b16 %v434
    %v503 = vunpack.c.l.b16 %v435
    %v504 = vunpack.c.l.b16 %v436
    %v505 = vunpack.c.l.b16 %v437
    %v506 = vunpack.c.l.b16 %v438
    %v507 = vunpack.c.l.b16 %v439
    %v508 = vunpack.c.l.b16 %v440
    %v509 = vunpack.c.l.b16 %v441
    %v510 = vunpack.c.l.b16 %v442
    %v511 = vunpack.c.l.b16 %v443
    %v512 = vunpack.c.l.b16 %v444
    %v513 = vunpack.c.l.b16 %v445
    %v514 = vunpack.c.l.b16 %v446
    %v515 = vunpack.c.l.b16 %v447
    %v516 = vunpack.c.l.b16 %v448
    %v517 = vpack.c.b16 %v486, %v485
    %v518 = vpack.c.b16 %v488, %v487
    %v519 = vpack.c.b16 %v490, %v489
    %v520 = vpack.c.b16 %v492, %v491
    %v521 = vpack.c.b16 %v494, %v493
    %v522 = vpack.c.b16 %v496, %v495
    %v523 = vpack.c.b16 %v498, %v497
    %v524 = vpack.c.b16 %v500, %v499
    %v525 = vpack.c.b16 %v502, %v501
    %v526 = vpack.c.b16 %v504, %v503
    %v527 = vpack.c.b16 %v506, %v505
    %v528 = vpack.c.b16 %v508, %v507
    %v529 = vpack.c.b16 %v510, %v509
    %v530 = vpack.c.b16 %v512, %v511
    %v531 = vpack.c.b16 %v514, %v513
    %v532 = vpack.c.b16 %v516, %v515
    %549 = vmatpush.bf16.msra.mxu0 %v524
    %550 = vmatpush.bf16.msra.mxu0 %v523
    %551 = vmatpush.bf16.msra.mxu0 %v522
    %552 = vmatpush.bf16.msra.mxu0 %v521
    %553 = vmatpush.bf16.msra.mxu0 %v520
    %554 = vmatpush.bf16.msra.mxu0 %v519
    %555 = vmatpush.bf16.msra.mxu0 %v518
    %556 = vmatpush.bf16.msra.mxu0 %v517
    %557 = vmatmul.bf16.gmra.mxu0 %v415
    %v558 = vpop.f32.mrf.mxu0
    %v559 = vadd.f32 %v451, %v558
    %v560 = vpop.f32.mrf.mxu0
    %v561 = vadd.f32 %v451, %v560
    %562 = vdwg.mxu0
    %563 = vmatpush.bf16.msra.mxu0 %v532
    %564 = vmatpush.bf16.msra.mxu0 %v531
    %565 = vmatpush.bf16.msra.mxu0 %v530
    %566 = vmatpush.bf16.msra.mxu0 %v529
    %567 = vmatpush.bf16.msra.mxu0 %v528
    %568 = vmatpush.bf16.msra.mxu0 %v527
    %569 = vmatpush.bf16.msra.mxu0 %v526
    %570 = vmatpush.bf16.msra.mxu0 %v525
    %571 = vmatmul.bf16.gmra.mxu0 %v416
    %v572 = vpop.f32.mrf.mxu0
    %v573 = vadd.f32 %v559, %v572
    %v574 = vpop.f32.mrf.mxu0
    %v575 = vadd.f32 %v561, %v574
    %576 = vdwg.mxu0
    %v577 = vpack.c.bf16 %v573, %v573
    %v578 = vpack.c.bf16 %v575, %v575
    %579 = vst [vmem:[%s9] sm:$0xf] %v577
    %580 = vst [vmem:[%s9 + $0x4] sm:$0xf] %v578
    // Predicated region
    $region54: #{dqn_forward.1} parent=1 // pred_check
      _
    $region55: #{dqn_forward.1} parent=1 // pred_check_branch
      %582 = sbr.rel (0) target = $region57
    $region56: #{dqn_forward.1} parent=1 // pred_region
      _
    $region57: #{dqn_forward.1} parent=1 // pred_fallthru
      _
    // Predicated region
    $region58: #{dqn_forward.1} parent=1 // pred_check
      _
    $region59: #{dqn_forward.1} parent=1 // pred_check_branch
      %584 = sbr.rel (0) target = $region61
    $region60: #{dqn_forward.1} parent=1 // pred_region
      _
    $region61: #{dqn_forward.1} parent=1 // pred_fallthru
      _
    %585 = vsyncpa [#allocation4], 1
    %586 = vsyncpa [#allocation6], 1
    %587 = vsyncpa [#allocation9], 1

</llo_original>
